<compile_context>
chip_gen: v7x
topology: tpu7x:2x2x1
jax: 0.10.0
libtpu: 0.0.40
codegen_flags: <defaults>
</compile_context>

<pallas_src>
import jax
import jax.numpy as jnp
from jax.experimental import pallas as pl
from jax.experimental.pallas import tpu as pltpu


def quickhead_kernel(x_ref, w_ref, o_ref):
    # x_ref block: (bblk, T, C); w_ref: (C, 3H) = [Wk.T | Wq.T | Wv.T];
    # o_ref block: (bblk, T, H)
    bblk, T, C = x_ref.shape
    H = w_ref.shape[1] // 3

    # Single fused projection: (bblk*T, C) @ (C, 3H) on the MXU.
    x2d = x_ref[...].reshape(bblk * T, C)
    kqv = jnp.dot(x2d, w_ref[...], preferred_element_type=jnp.float32)
    kqv = kqv.reshape(bblk, T, 3 * H)                 # tile-aligned reshape (T=8)

    # One sublane (axis=1) reduction yields sum_T(k) | sum_T(q) | sum_T(v).
    sums = jnp.sum(kqv, axis=1, keepdims=True)        # (bblk, 1, 3H)
    collective_k = sums[:, :, :H]                     # (bblk, 1, H)
    collective_v = sums[:, :, 2 * H:]                 # (bblk, 1, H)
    q = kqv[:, :, H:2 * H]                            # (bblk, T, H)

    qk = q * collective_k                             # broadcast over T

    # softmax over the T (sublane) axis, matching torch.softmax(qk, dim=1)
    m = jnp.max(qk, axis=1, keepdims=True)
    e = jnp.exp(qk - m)
    denom = jnp.sum(e, axis=1, keepdims=True)
    attention_weights = e * pl.reciprocal(denom, approx=True)

    o_ref[...] = (collective_v * attention_weights).astype(o_ref.dtype)


def quickhead(x, wk, wq, wv, *, bblk=None):
    """x: (B, T, C) float32; wk/wq/wv: (H, C) PyTorch-Linear-style weights."""
    B, T, C = x.shape
    H = wk.shape[0]

    if bblk is None:
        # One grid step for small B (v5e/v6e: grid is a serial loop, so fewer
        # steps is strictly better).  For large B on v7x, pick bblk <= B//2 so
        # both TensorCores get a block.
        bblk = B
    assert B % bblk == 0, "bblk must divide B"

    # Fuse the three projections into one (C, 3H) weight: columns [k | q | v].
    w_fused = jnp.concatenate([wk.T, wq.T, wv.T], axis=1)

    return pl.pallas_call(
        quickhead_kernel,
        out_shape=jax.ShapeDtypeStruct((B, T, H), jnp.float32),
        grid=(B // bblk,),
        in_specs=[
            pl.BlockSpec((bblk, T, C), lambda i: (i, 0, 0)),
            pl.BlockSpec((C, 3 * H), lambda i: (0, 0)),   # resident across steps
        ],
        out_specs=pl.BlockSpec((bblk, T, H), lambda i: (i, 0, 0)),
        compiler_params=pltpu.CompilerParams(
            dimension_semantics=("parallel",),
        ),
    )(x, w_fused)


def quickhead_ref(x, wk, wq, wv):
    """Plain-JAX reference mirroring the PyTorch forward."""
    k = x @ wk.T
    q = x @ wq.T
    v = x @ wv.T
    collective_k = k.sum(axis=1, keepdims=True)
    qk = q * collective_k
    attention_weights = jax.nn.softmax(qk, axis=1)
    collective_v = v.sum(axis=1, keepdims=True)
    return collective_v * attention_weights


if __name__ == "__main__":
    # n_embd = 256 -> sqrt_d = 16 ; block_size (=T) = 8 ; head_size = 32 ; batch = 2
    B, T, C, H = 2, 8, 16, 32

    key = jax.random.PRNGKey(0)
    kx, kk, kq, kv = jax.random.split(key, 4)

    x = jax.random.normal(kx, (B, T, C), dtype=jnp.float32)
    # nn.Linear(sqrt_d, head_size, bias=False) weights: shape (head_size, sqrt_d)
    wk = jax.random.normal(kk, (H, C), dtype=jnp.float32) * (1.0 / jnp.sqrt(C))
    wq = jax.random.normal(kq, (H, C), dtype=jnp.float32) * (1.0 / jnp.sqrt(C))
    wv = jax.random.normal(kv, (H, C), dtype=jnp.float32) * (1.0 / jnp.sqrt(C))

    out = quickhead(x, wk, wq, wv)
    out = jax.block_until_ready(out)

    ref = quickhead_ref(x, wk, wq, wv)
    assert out.shape == (B, T, H)
    # Tolerance relaxed slightly for the EUP approximate reciprocal in softmax.
    assert jnp.allclose(out, ref, atol=2e-3, rtol=2e-2), "mismatch vs reference"

    print("KERNEL_OK")
</pallas_src>

<mosaic_0001>
module attributes {stable_mosaic.version = 11 : i64} {
  func.func @quickhead_kernel(%arg0: i32, %arg1: memref<2x8x16xf32, #tpu.memory_space<vmem>>, %arg2: memref<16x96xf32, #tpu.memory_space<vmem>>, %arg3: memref<2x8x32xf32, #tpu.memory_space<vmem>>) attributes {dimension_semantics = [#tpu.dimension_semantics<parallel>], iteration_bounds = array<i64: 1>, scalar_prefetch = 0 : i64, scratch_operands = 0 : i64, tpu.core_type = #tpu.core_type<tc>, window_params = [{transform_indices = @transform_0, window_bounds = array<i64: 2, 8, 16>}, {pipeline_mode = #tpu.pipeline_mode<synchronous>, transform_indices = @transform_1, window_bounds = array<i64: 16, 96>}, {transform_indices = @transform_2, window_bounds = array<i64: 2, 8, 32>}]} {
    %c0 = arith.constant 0 : index
    %c0_0 = arith.constant 0 : index
    %c0_1 = arith.constant 0 : index
    %0 = vector.load %arg1[%c0, %c0_0, %c0_1] : memref<2x8x16xf32, #tpu.memory_space<vmem>>, vector<2x8x16xf32>
    %1 = vector.shape_cast %0 : vector<2x8x16xf32> to vector<16x16xf32>
    %c0_2 = arith.constant 0 : index
    %c0_3 = arith.constant 0 : index
    %2 = vector.load %arg2[%c0_2, %c0_3] : memref<16x96xf32, #tpu.memory_space<vmem>>, vector<16x96xf32>
    %cst = arith.constant dense<0.000000e+00> : vector<16x96xf32>
    %3 = tpu.matmul %1, %2, %cst {dimension_numbers = #tpu.dot_dimension_numbers<[1], [0], [0], [1], [0, 0, 1, 1], [], []>} : vector<16x16xf32>, vector<16x96xf32>, vector<16x96xf32> -> vector<16x96xf32>
    %4 = vector.shape_cast %3 : vector<16x96xf32> to vector<2x8x96xf32>
    %cst_4 = arith.constant dense<0.000000e+00> : vector<2x96xf32>
    %5 = vector.multi_reduction <add>, %4, %cst_4 [1] : vector<2x8x96xf32> to vector<2x96xf32>
    %6 = vector.shape_cast %5 : vector<2x96xf32> to vector<2x1x96xf32>
    %7 = vector.extract_strided_slice %6 {offsets = [0, 0, 0], sizes = [2, 1, 32], strides = [1, 1, 1]} : vector<2x1x96xf32> to vector<2x1x32xf32>
    %8 = vector.extract_strided_slice %6 {offsets = [0, 0, 64], sizes = [2, 1, 32], strides = [1, 1, 1]} : vector<2x1x96xf32> to vector<2x1x32xf32>
    %9 = vector.extract_strided_slice %4 {offsets = [0, 0, 32], sizes = [2, 8, 32], strides = [1, 1, 1]} : vector<2x8x96xf32> to vector<2x8x32xf32>
    %10 = vector.broadcast %7 : vector<2x1x32xf32> to vector<2x8x32xf32>
    %11 = arith.mulf %9, %10 : vector<2x8x32xf32>
    %cst_5 = arith.constant dense<0xFF800000> : vector<2x32xf32>
    %12 = vector.multi_reduction <maximumf>, %11, %cst_5 [1] : vector<2x8x32xf32> to vector<2x32xf32>
    %13 = vector.shape_cast %12 : vector<2x32xf32> to vector<2x1x32xf32>
    %14 = vector.broadcast %13 : vector<2x1x32xf32> to vector<2x8x32xf32>
    %15 = arith.subf %11, %14 : vector<2x8x32xf32>
    %16 = math.exp %15 : vector<2x8x32xf32>
    %cst_6 = arith.constant dense<0.000000e+00> : vector<2x32xf32>
    %17 = vector.multi_reduction <add>, %16, %cst_6 [1] : vector<2x8x32xf32> to vector<2x32xf32>
    %18 = vector.shape_cast %17 : vector<2x32xf32> to vector<2x1x32xf32>
    %19 = tpu.reciprocal %18 {approx = true} : vector<2x1x32xf32> -> vector<2x1x32xf32>
    %20 = vector.broadcast %19 : vector<2x1x32xf32> to vector<2x8x32xf32>
    %21 = arith.mulf %16, %20 : vector<2x8x32xf32>
    %22 = vector.broadcast %8 : vector<2x1x32xf32> to vector<2x8x32xf32>
    %23 = arith.mulf %22, %21 : vector<2x8x32xf32>
    %c0_7 = arith.constant 0 : index
    %c0_8 = arith.constant 0 : index
    %c0_9 = arith.constant 0 : index
    %24 = vector.load %arg3[%c0_7, %c0_8, %c0_9] : memref<2x8x32xf32, #tpu.memory_space<vmem>>, vector<2x8x32xf32>
    tpu.vector_store %arg3[%c0_7, %c0_8, %c0_9], %23 {strides = array<i32>} : memref<2x8x32xf32, #tpu.memory_space<vmem>>, vector<2x8x32xf32>,
    return
  }
  func.func @transform_0(%arg0: i32) -> (i32, i32, i32) {
    %c0_i32 = arith.constant 0 : i32
    %c0_i32_0 = arith.constant 0 : i32
    %c0_i32_1 = arith.constant 0 : i32
    return %arg0, %c0_i32, %c0_i32_0 : i32, i32, i32
  }
  func.func @transform_1(%arg0: i32) -> (i32, i32) {
    %c0_i32 = arith.constant 0 : i32
    %c0_i32_0 = arith.constant 0 : i32
    %c0_i32_1 = arith.constant 0 : i32
    return %c0_i32, %c0_i32_0 : i32, i32
  }
  func.func @transform_2(%arg0: i32) -> (i32, i32, i32) {
    %c0_i32 = arith.constant 0 : i32
    %c0_i32_0 = arith.constant 0 : i32
    %c0_i32_1 = arith.constant 0 : i32
    return %arg0, %c0_i32, %c0_i32_0 : i32, i32, i32
  }
}

</mosaic_0001>

<llo_original>
// kernel: tpu_custom_call.1
$region0: #{tpu_custom_call.1}
  #allocation0 [shape = 'u32[]', space=smem, size = 0x4, offset = 0x4, fixed_abs, tag = 'smem constant byte address 0x4 - core index']
  #allocation1 [shape = 'u32[144,128]{1,0:T(1,128)}', space=vmem, size = 0x12000, scoped, tag = 'internal scratch']
  %s0 = inlined_call_operand.hbm [shape: f32[2,8,16], index: 0, kind: input, shape index: {}]
  %s1 = inlined_call_operand.hbm [shape: f32[16,96], index: 1, kind: input, shape index: {}]
  %s2 = inlined_call_operand.hbm [shape: f32[2,8,32], index: 2, kind: output, shape index: {}]
  %s3 = sld [smem:[#allocation0]]
  $region26: #{tpu_custom_call.1} parent=0
    _
  %s5 = ssub.s32 1, %s3
  %s6 = scalar_select 0, %s5, %s3
  $region1: #{tpu_custom_call.1} parent=0
    #allocation2 [shape = 'u8[8192]{0}', space=vmem, size = 0x2000, scoped, tag = 'input window, operand 0, single buffered']
    #allocation3 [shape = 's32[1]{0}', space=sflag, size = 0x4, scoped, tag = 'scoped memory for tpu_custom_call.1']
    #allocation4 [shape = 's32[1]{0}', space=sflag, size = 0x4, scoped, tag = 'scoped memory for tpu_custom_call.1']
    #allocation5 [shape = 'u8[8192]{0}', space=vmem, size = 0x2000, scoped, tag = 'input window, operand 1, single buffered']
    #allocation6 [shape = 's32[1]{0}', space=sflag, size = 0x4, scoped, tag = 'scoped memory for tpu_custom_call.1']
    #allocation7 [shape = 'u8[8192]{0}', space=vmem, size = 0x2000, scoped, tag = 'output window, operand 0, single buffered']
    %7 = vsyncpa [#allocation3], 0
    %8 = vsyncpa [#allocation6], 0
    %9 = vsyncpa [#allocation4], 0
    // Predicated region
    $region2: #{tpu_custom_call.1} parent=1 // pred_check
      _
    $region3: #{tpu_custom_call.1} parent=1 // pred_check_branch
      %11 = sbr.rel (0) target = $region5
    $region4: #{tpu_custom_call.1} parent=1 // pred_region
      %s13 = ssub.s32 256, 256
      %14 = vsyncadd [#allocation3], %s13
      %s15 = sshll.u32 [#allocation2], 4
      %s16 = int_to_ptr.vmem [resolvable:$true] %s15
      %21 = dma.hbm_to_vmem [thread:$0]  %s0, 256, %s16, [#allocation3], 128, 128, 8
    $region5: #{tpu_custom_call.1} parent=1 // pred_fallthru
      _
    // Predicated region
    $region6: #{tpu_custom_call.1} parent=1 // pred_check
      _
    $region7: #{tpu_custom_call.1} parent=1 // pred_check_branch
      %23 = sbr.rel (0) target = $region9
    $region8: #{tpu_custom_call.1} parent=1 // pred_region
      %s25 = ssub.s32 256, 256
      %26 = vsyncadd [#allocation6], %s25
      %s27 = sshll.u32 [#allocation5], 4
      %s28 = int_to_ptr.vmem [resolvable:$true] %s27
      %33 = dma.hbm_to_vmem [thread:$0]  %s1, 256, %s28, [#allocation6], 128, 128, 8
    $region9: #{tpu_custom_call.1} parent=1 // pred_fallthru
      _
    // Predicated region
    $region10: #{tpu_custom_call.1} parent=1 // pred_check
      _
    $region11: #{tpu_custom_call.1} parent=1 // pred_check_branch
      %35 = sbr.rel (0) target = $region13
    $region12: #{tpu_custom_call.1} parent=1 // pred_region
      %36 = dma.done [#allocation3], 256
    $region13: #{tpu_custom_call.1} parent=1 // pred_fallthru
      _
    // Predicated region
    $region14: #{tpu_custom_call.1} parent=1 // pred_check
      _
    $region15: #{tpu_custom_call.1} parent=1 // pred_check_branch
      %38 = sbr.rel (0) target = $region17
    $region16: #{tpu_custom_call.1} parent=1 // pred_region
      %39 = dma.done [#allocation6], 256
    $region17: #{tpu_custom_call.1} parent=1 // pred_fallthru
      _
    %v40 = vld [vmem:[#allocation2] sm:$0xff]
    %v41 = vld [vmem:[#allocation2 + $0x8] sm:$0xff]
    %v42 = vld [vmem:[#allocation5] sm:$0xff]
    %v43 = vld [vmem:[#allocation5 + $0x8] sm:$0xff]
    %vm44 = vcmask 130048
    %v46 = vsel %vm44, %v40, 0
    %v49 = vsel %vm44, %v41, 0
    %51 = vmatprep.subr.mxu0 0.0
    %52 = vmatpush1.msra.mxu0 %v42
    %53 = vmatprep.subr.mxu0 0.0
    %54 = vmatpush1.msra.mxu0 %v43
    %55 = vmatprep.subr.mxu0 0.0
    %56 = vmatpush1.msra.mxu0 0.0
    %57 = vmatprep.subr.mxu0 0.0
    %58 = vmatpush1.msra.mxu0 0.0
    %59 = vmatprep.subr.mxu0 0.0
    %60 = vmatpush1.msra.mxu0 0.0
    %61 = vmatprep.subr.mxu0 0.0
    %62 = vmatpush1.msra.mxu0 0.0
    %63 = vmatprep.subr.mxu0 0.0
    %64 = vmatpush1.msra.mxu0 0.0
    %65 = vmatprep.subr.mxu0 0.0
    %66 = vmatpush1.msra.mxu0 0.0
    %67 = vmatprep.subr.mxu0 0.0
    %68 = vmatpush1.msra.mxu0 0.0
    %69 = vmatprep.subr.mxu0 0.0
    %70 = vmatpush1.msra.mxu0 0.0
    %71 = vmatprep.subr.mxu0 0.0
    %72 = vmatpush1.msra.mxu0 0.0
    %73 = vmatprep.subr.mxu0 0.0
    %74 = vmatpush1.msra.mxu0 0.0
    %75 = vmatprep.subr.mxu0 0.0
    %76 = vmatpush1.msra.mxu0 0.0
    %77 = vmatprep.subr.mxu0 0.0
    %78 = vmatpush1.msra.mxu0 0.0
    %79 = vmatprep.subr.mxu0 0.0
    %80 = vmatpush1.msra.mxu0 0.0
    %81 = vmatprep.subr.mxu0 0.0
    %82 = vmatpush1.msra.mxu0 0.0
    %83 = vmatprep.subr.mxu0 0.0
    %84 = vmatpush1.msra.mxu0 0.0
    %85 = vmatprep.subr.mxu0 0.0
    %86 = vmatpush1.msra.mxu0 0.0
    %87 = vmatprep.subr.mxu0 0.0
    %88 = vmatpush1.msra.mxu0 0.0
    %89 = vmatprep.subr.mxu0 0.0
    %90 = vmatpush1.msra.mxu0 0.0
    %91 = vmatprep.subr.mxu0 0.0
    %92 = vmatpush1.msra.mxu0 0.0
    %93 = vmatprep.subr.mxu0 0.0
    %94 = vmatpush1.msra.mxu0 0.0
    %95 = vmatprep.subr.mxu0 0.0
    %96 = vmatpush1.msra.mxu0 0.0
    %97 = vmatprep.subr.mxu0 0.0
    %98 = vmatpush1.msra.mxu0 0.0
    %99 = vmatprep.subr.mxu0 0.0
    %100 = vmatpush1.msra.mxu0 0.0
    %101 = vmatprep.subr.mxu0 0.0
    %102 = vmatpush1.msra.mxu0 0.0
    %103 = vmatprep.subr.mxu0 0.0
    %104 = vmatpush1.msra.mxu0 0.0
    %105 = vmatprep.subr.mxu0 0.0
    %106 = vmatpush1.msra.mxu0 0.0
    %107 = vmatprep.subr.mxu0 0.0
    %108 = vmatpush1.msra.mxu0 0.0
    %109 = vmatprep.subr.mxu0 0.0
    %110 = vmatpush1.msra.mxu0 0.0
    %111 = vmatprep.subr.mxu0 0.0
    %112 = vmatpush1.msra.mxu0 0.0
    %113 = vmatprep.subr.mxu0 0.0
    %114 = vmatpush1.msra.mxu0 0.0
    %115 = vmatprep.mubr.f32.mxu0 0.0
    %116 = vmatmul.mubr.f32.gmra.mrb[0].mxu0 %v46
    %v117 = vpop.f32.mrb[0].mxu0
    %v118 = vadd.f32 0.0, %v117
    %v119 = vpop.f32.mrb[0].mxu0
    %120 = vmatprep.mubr.f32.mxu0 0.0
    %121 = vmatmul.mubr.f32.gmra.mrb[0].mxu0 %v49
    %v122 = vpop.f32.mrb[0].mxu0
    %v123 = vadd.f32 0.0, %v122
    %v124 = vpop.f32.mrb[0].mxu0
    %125 = vdwg.mxu0
    %vm126 = vcmask 785408
    %v127 = vsel %vm126, %v118, 0.0
    %v128 = vrot.slane %v127, 4
    %v129 = vadd.f32 %v127, %v128
    %v130 = vrot.slane %v129, 2
    %v131 = vadd.f32 %v129, %v130
    %v132 = vrot.slane %v131, 1
    %v133 = vadd.f32 %v131, %v132
    %v134 = vsel %vm126, %v123, 0.0
    %v135 = vrot.slane %v134, 4
    %v136 = vadd.f32 %v134, %v135
    %v137 = vrot.slane %v136, 2
    %v138 = vadd.f32 %v136, %v137
    %v139 = vrot.slane %v138, 1
    %v140 = vadd.f32 %v138, %v139
    %143 = vrot.lane.b32.xlu0 %v133, 32
    %v144 = vpop.permute.xlu0 %143
    %145 = vrot.lane.b32.xlu0 %v140, 32
    %v146 = vpop.permute.xlu0 %145
    %v149 = vmul.f32 %v118, %v144
    %v150 = vmul.f32 %v123, %v146
    %vm151 = vcmask 523520
    %v152 = vsel %vm151, %v149, -inf
    %v153 = vrot.slane %v152, 4
    %v154 = vmax.f32 %v152, %v153
    %v155 = vrot.slane %v154, 2
    %v156 = vmax.f32 %v154, %v155
    %v157 = vrot.slane %v156, 1
    %v158 = vmax.f32 %v156, %v157
    %v159 = vsel %vm151, %v150, -inf
    %v160 = vrot.slane %v159, 4
    %v161 = vmax.f32 %v159, %v160
    %v162 = vrot.slane %v161, 2
    %v163 = vmax.f32 %v161, %v162
    %v164 = vrot.slane %v163, 1
    %v165 = vmax.f32 %v163, %v164
    %v166 = vsub.f32 %v149, %v158
    %v167 = vsub.f32 %v150, %v165
    %v168 = vmul.f32 %v166, 1.442695
    %v169 = vpow.pop %v168
    %v170 = vmul.f32 %v167, 1.442695
    %v171 = vpow.pop %v170
    %v172 = vsel %vm151, %v169, 0.0
    %v173 = vrot.slane %v172, 4
    %v174 = vadd.f32 %v172, %v173
    %v175 = vrot.slane %v174, 2
    %v176 = vadd.f32 %v174, %v175
    %v177 = vrot.slane %v176, 1
    %v178 = vadd.f32 %v176, %v177
    %v179 = vsel %vm151, %v171, 0.0
    %v180 = vrot.slane %v179, 4
    %v181 = vadd.f32 %v179, %v180
    %v182 = vrot.slane %v181, 2
    %v183 = vadd.f32 %v181, %v182
    %v184 = vrot.slane %v183, 1
    %v185 = vadd.f32 %v183, %v184
    %v186 = vrcp.pop %v178
    %v187 = vrcp.pop %v185
    %v188 = vmul.f32 %v169, %v186
    %v189 = vmul.f32 %v171, %v187
    %192 = vrot.lane.b32.xlu0 %v188, 32
    %v193 = vpop.permute.xlu0 %192
    %194 = vrot.lane.b32.xlu0 %v189, 32
    %v195 = vpop.permute.xlu0 %194
    %v198 = vmul.f32 %v133, %v193
    %v199 = vmul.f32 %v140, %v195
    %202 = vrot.lane.b32.xlu0 %v198, 64
    %v203 = vpop.permute.xlu0 %202
    %204 = vrot.lane.b32.xlu0 %v199, 64
    %v205 = vpop.permute.xlu0 %204
    %vm208 = vcmask 261120
    %209 = vst.msk [vmem:[#allocation7] sm:$0xff] %vm208, %v203
    %210 = vst.msk [vmem:[#allocation7 + $0x8] sm:$0xff] %vm208, %v205
    // Predicated region
    $region18: #{tpu_custom_call.1} parent=1 // pred_check
      _
    $region19: #{tpu_custom_call.1} parent=1 // pred_check_branch
      %212 = sbr.rel (0) target = $region21
    $region20: #{tpu_custom_call.1} parent=1 // pred_region
      %s214 = ssub.s32 256, 256
      %215 = vsyncadd [#allocation4], %s214
      %s216 = sshll.u32 [#allocation7], 4
      %s217 = int_to_ptr.vmem [resolvable:$true] %s216
      %222 = dma.vmem_to_hbm [thread:$0]  %s217, 256, %s2, [#allocation4], 128, 128, 8
    $region21: #{tpu_custom_call.1} parent=1 // pred_fallthru
      _
    // Predicated region
    $region22: #{tpu_custom_call.1} parent=1 // pred_check
      _
    $region23: #{tpu_custom_call.1} parent=1 // pred_check_branch
      %224 = sbr.rel (0) target = $region25
    $region24: #{tpu_custom_call.1} parent=1 // pred_region
      %225 = dma.done [#allocation4], 256
    $region25: #{tpu_custom_call.1} parent=1 // pred_fallthru
      _
    %226 = vsyncpa [#allocation3], 1
    %227 = vsyncpa [#allocation6], 1
    %228 = vsyncpa [#allocation4], 1

</llo_original>
